<compile_context>
chip_gen: v5e
topology: v5e:2x2
jax: 0.10.0
libtpu: 0.0.40
codegen_flags: <defaults>
</compile_context>

<pallas_src>
import functools

import jax
import jax.numpy as jnp
from jax import lax
from jax.experimental import pallas as pl
from jax.experimental.pallas import tpu as pltpu


def _round_up(x, m):
    return (x + m - 1) // m * m


def basic_block_kernel(x_ref, mask_ref, w1sc_ref, w2_ref, b_ref, out_ref,
                       xpad_ref, mid_ref, *, H, W, Wp, PAD):
    """One image per grid step.

    x_ref    : (1, Cin, H*W)   bf16  unpadded input, spatial flattened on lanes
    mask_ref : (1, HWp)        f32   1.0 at real pixel columns, 0.0 at h-pad
    w1sc_ref : (2P, 9*Cin)     bf16  fused [conv1 | 1x1 shortcut] im2col weight
    w2_ref   : (P, 9*P)        bf16  conv2 im2col weight (BN2 scale folded)
    b_ref    : (3P, 1)         f32   folded biases [b1 ; bsc ; b2]
    out_ref  : (1, P, HWp)     f32   lane-dense padded output slab
    xpad_ref : (Cin, TOT)      bf16  scratch: zero-padded input slab
    mid_ref  : (P, TOT)        bf16  scratch: zero-padded conv1 output slab
    """
    P = out_ref.shape[1]
    HWp = H * Wp

    # ---- build the padded input slab in VMEM (replaces wrapper-side jnp.pad).
    # Zero the whole slab every step; the 'parallel' grid steps may land on
    # different cores with separate scratch, so nothing here may be gated on
    # program_id == 0.  (Cin, TOT) bf16 is tiny; at real sizes zero only the
    # pad regions.
    xpad_ref[...] = jnp.zeros_like(xpad_ref)
    for h in range(H):                       # static unroll: H small stores
        xpad_ref[:, pl.ds(PAD + h * Wp + 1, W)] = x_ref[0, :, pl.ds(h * W, W)]

    # Keep the vertical zero-pad regions of the conv2 scratch zeroed each step.
    zpad = jnp.zeros((P, PAD), jnp.bfloat16)
    mid_ref[:, pl.ds(0, PAD)] = zpad
    mid_ref[:, pl.ds(PAD + HWp, PAD)] = zpad

    def im2col(ref):
        # 9 shifted taps concatenated along the contraction (sublane) axis ->
        # ONE deep MXU matmul per conv.
        # TODO(synk): at real channel counts (C >= 128/256) benchmark per-tap
        # accumulating dots / pltpu.roll lane-shifts against this concat (it
        # materializes a (9C, HWp) temporary through the vst/vld slots).
        return jnp.concatenate(
            [ref[:, pl.ds(PAD + dy * Wp + dx, HWp)]
             for dy in (-1, 0, 1) for dx in (-1, 0, 1)], axis=0)

    b = b_ref[...]                                   # (3P, 1) f32
    mask = mask_ref[...]                             # (1, HWp) f32

    # ---- fused [conv1+BN1 | 1x1 shortcut+BN] : single bf16 MXU matmul -------
    patch1 = im2col(xpad_ref)                        # (9*Cin, HWp) bf16
    acc1 = jnp.dot(w1sc_ref[...], patch1,
                   preferred_element_type=jnp.float32) + b[:2 * P]
    out1 = jnp.maximum(acc1[:P], 0.0)                # conv1 + bn1 + relu (f32)
    sc = acc1[P:]                                    # shortcut 1x1 + bn (f32)

    # Re-zero the horizontal pad columns with the precomputed mask and store
    # bf16 so conv2 runs as a true bf16 x bf16 MXU matmul.
    mid_ref[:, pl.ds(PAD, HWp)] = (out1 * mask).astype(jnp.bfloat16)

    # ---- conv2 + BN2, residual add, ReLU -------------------------------------
    patch2 = im2col(mid_ref)                         # (9*P, HWp) bf16
    acc2 = jnp.dot(w2_ref[...], patch2,
                   preferred_element_type=jnp.float32) + b[2 * P:]
    # (P, HWp) with HWp a multiple of 128 -> unmasked lane-dense stores.
    out_ref[0, :, :] = jnp.maximum(acc2 + sc, 0.0).astype(out_ref.dtype)


def basic_block_forward(x_nchw, params):
    N, Cin, H, W = x_nchw.shape
    P = params['w1'].shape[0]                # planes (expansion = 1)
    # TODO(synk): stride>1 BasicBlock variant (strided 3x3 / 1x1) not implemented.

    Wp = _round_up(W + 2, 8)                 # padded row width -> H*Wp lane-dense
    PAD = _round_up(Wp + 1, 8)               # >= Wp+1 zeros before/after the rows
    HWp = H * Wp
    TOT = HWp + 2 * PAD

    # Unpadded bf16 input, spatial flattened onto lanes (contiguous reshape,
    # no HBM pass); the kernel builds the padded slab itself.
    x_flat = x_nchw.astype(jnp.bfloat16).reshape(N, Cin, H * W)

    # Column-validity mask for the padded row layout (built once, reused by
    # every grid step through a constant BlockSpec).
    col = jnp.arange(HWp, dtype=jnp.int32) % Wp
    mask = jnp.logical_and(col >= 1, col <= W).astype(jnp.float32)[None, :]

    # Fold eval-mode BN into the conv weights (scale) and a per-channel bias.
    def fold(w, gamma, beta, mean, var, eps=1e-5):
        s = gamma / jnp.sqrt(var + eps)
        return w * s[:, None, None, None], beta - mean * s

    w1e, b1 = fold(params['w1'], *params['bn1'])
    w2e, b2 = fold(params['w2'], *params['bn2'])
    wsce, bsc = fold(params['wsc'], *params['bnsc'])

    # Fused [conv1 | shortcut] im2col weight (2P, 9*Cin): tap-major /
    # channel-minor, with the 1x1 shortcut in the centre-tap columns of its
    # P extra rows.  Matches the tap order of im2col() in the kernel.
    w1_im2col = jnp.transpose(w1e, (0, 2, 3, 1))                       # (P,3,3,Cin)
    wsc_im2col = jnp.zeros((P, 3, 3, Cin), jnp.float32).at[:, 1, 1, :].set(
        wsce[:, :, 0, 0])
    w1sc = jnp.concatenate([w1_im2col, wsc_im2col], axis=0
                           ).reshape(2 * P, 9 * Cin).astype(jnp.bfloat16)
    w2q = jnp.transpose(w2e, (0, 2, 3, 1)).reshape(P, 9 * P).astype(jnp.bfloat16)
    b_all = jnp.concatenate([b1, bsc, b2]).reshape(3 * P, 1).astype(jnp.float32)

    kernel = functools.partial(basic_block_kernel, H=H, W=W, Wp=Wp, PAD=PAD)
    const2 = lambda n: (0, 0)                # weights / biases / mask: one block
    out_lanes = pl.pallas_call(
        kernel,
        out_shape=jax.ShapeDtypeStruct((N, P, HWp), jnp.float32),
        grid_spec=pltpu.PrefetchScalarGridSpec(
            num_scalar_prefetch=0,
            grid=(N,),                       # N=2 -> both v7x TensorCores busy
            in_specs=[
                pl.BlockSpec((1, Cin, H * W), lambda n: (n, 0, 0)),  # x (unpadded)
                pl.BlockSpec((1, HWp), const2),                      # column mask
                pl.BlockSpec((2 * P, 9 * Cin), const2),              # w1 | wsc
                pl.BlockSpec((P, 9 * P), const2),                    # w2
                pl.BlockSpec((3 * P, 1), const2),                    # biases
            ],
            out_specs=pl.BlockSpec((1, P, HWp), lambda n: (n, 0, 0)),
            scratch_shapes=[pltpu.VMEM((Cin, TOT), jnp.bfloat16),
                            pltpu.VMEM((P, TOT), jnp.bfloat16)],
        ),
        compiler_params=pltpu.CompilerParams(
            dimension_semantics=("parallel",)),
    )(x_flat, mask, w1sc, w2q, b_all)

    # Padded lane-dense slab -> NCHW (drop the pad columns).  A real network
    # would keep the slab format between blocks and skip this slice.
    return out_lanes.reshape(N, P, H, Wp)[:, :, :, 1:W + 1]


def ref_basic_block_f32(x, params):
    """Exact eval-mode PyTorch semantics in f32."""
    def conv(x, w, pad):
        return lax.conv_general_dilated(
            x, w, window_strides=(1, 1), padding=((pad, pad), (pad, pad)),
            dimension_numbers=('NCHW', 'OIHW', 'NCHW'))

    def bn(x, g, b, m, v, eps=1e-5):
        s = g / jnp.sqrt(v + eps)
        return x * s[None, :, None, None] + (b - m * s)[None, :, None, None]

    out = jax.nn.relu(bn(conv(x, params['w1'], 1), *params['bn1']))
    out = bn(conv(out, params['w2'], 1), *params['bn2'])
    sc = bn(conv(x, params['wsc'], 0), *params['bnsc'])
    return jax.nn.relu(out + sc)


def ref_basic_block_bf16_operands(x, params):
    """Reference for exactly what the kernel computes: BN scales folded into
    the conv weights, x / weights / conv1-output rounded to bf16 (exactly
    f32-representable), f32 accumulation and f32 elementwise math."""
    q = lambda a: a.astype(jnp.bfloat16).astype(jnp.float32)

    def conv(x, w, pad):
        return lax.conv_general_dilated(
            x, w, window_strides=(1, 1), padding=((pad, pad), (pad, pad)),
            dimension_numbers=('NCHW', 'OIHW', 'NCHW'))

    def fold(w, gamma, beta, mean, var, eps=1e-5):
        s = gamma / jnp.sqrt(var + eps)
        return q(w * s[:, None, None, None]), beta - mean * s

    w1q, b1 = fold(params['w1'], *params['bn1'])
    w2q, b2 = fold(params['w2'], *params['bn2'])
    wscq, bsc = fold(params['wsc'], *params['bnsc'])
    xq = q(x)
    out = jax.nn.relu(conv(xq, w1q, 1) + b1[None, :, None, None])
    out = q(out)                       # kernel keeps conv1's output in bf16 VMEM
    out = conv(out, w2q, 1) + b2[None, :, None, None]
    sc = conv(xq, wscq, 0) + bsc[None, :, None, None]
    return jax.nn.relu(out + sc)


if __name__ == "__main__":
    # BasicBlock(in_planes=4, planes=8, stride=1): shortcut = 1x1 conv + BN.
    N, Cin, H, W = 2, 4, 16, 16
    planes = 8

    ks = jax.random.split(jax.random.PRNGKey(0), 16)

    def bn_params(k0, k1, k2, k3, c):
        gamma = 1.0 + 0.1 * jax.random.normal(ks[k0], (c,), jnp.float32)
        beta = 0.1 * jax.random.normal(ks[k1], (c,), jnp.float32)
        mean = 0.1 * jax.random.normal(ks[k2], (c,), jnp.float32)
        var = 0.5 + jax.random.uniform(ks[k3], (c,), jnp.float32)
        return (gamma, beta, mean, var)

    params = {
        'w1': 0.2 * jax.random.normal(ks[0], (planes, Cin, 3, 3), jnp.float32),
        'w2': 0.2 * jax.random.normal(ks[1], (planes, planes, 3, 3), jnp.float32),
        'wsc': 0.2 * jax.random.normal(ks[2], (planes, Cin, 1, 1), jnp.float32),
        'bn1': bn_params(3, 4, 5, 6, planes),
        'bn2': bn_params(7, 8, 9, 10, planes),
        'bnsc': bn_params(11, 12, 13, 14, planes),
    }
    x = jax.random.normal(ks[15], (N, Cin, H, W), jnp.float32)

    out = jax.block_until_ready(jax.jit(basic_block_forward)(x, params))

    # Tight check: same bf16-rounded operands as the kernel (only accumulation
    # order differs).  Loose check: exact f32 PyTorch eval semantics; the only
    # deviation is the bf16 rounding of the MXU operands and of the conv1 output.
    ref_q = ref_basic_block_bf16_operands(x, params)
    ref_f = ref_basic_block_f32(x, params)

    assert out.shape == ref_f.shape, (out.shape, ref_f.shape)
    err_q = float(jnp.max(jnp.abs(out - ref_q)))
    err_f = float(jnp.max(jnp.abs(out - ref_f)))
    assert jnp.allclose(out, ref_q, atol=2e-3, rtol=2e-3), f"bf16-ref max err {err_q}"
    assert jnp.allclose(out, ref_f, atol=2e-1, rtol=2e-1), f"f32-ref max err {err_f}"
    print("KERNEL_OK")
</pallas_src>

<mosaic_0001>
module attributes {stable_mosaic.version = 11 : i64} {
  func.func @basic_block_kernel(%arg0: i32, %arg1: memref<1x4x256xbf16, #tpu.memory_space<vmem>>, %arg2: memref<1x384xf32, #tpu.memory_space<vmem>>, %arg3: memref<16x36xbf16, #tpu.memory_space<vmem>>, %arg4: memref<8x72xbf16, #tpu.memory_space<vmem>>, %arg5: memref<24x1xf32, #tpu.memory_space<vmem>>, %arg6: memref<1x8x384xf32, #tpu.memory_space<vmem>>, %arg7: memref<4x448xbf16, #tpu.memory_space<vmem>>, %arg8: memref<8x448xbf16, #tpu.memory_space<vmem>>) attributes {dimension_semantics = [#tpu.dimension_semantics<parallel>], iteration_bounds = array<i64: 2>, scalar_prefetch = 0 : i64, scratch_operands = 2 : i64, tpu.core_type = #tpu.core_type<tc>, window_params = [{transform_indices = @transform_0, window_bounds = array<i64: 1, 4, 256>}, {pipeline_mode = #tpu.pipeline_mode<synchronous>, transform_indices = @transform_1, window_bounds = array<i64: 1, 384>}, {pipeline_mode = #tpu.pipeline_mode<synchronous>, transform_indices = @transform_2, window_bounds = array<i64: 16, 36>}, {pipeline_mode = #tpu.pipeline_mode<synchronous>, transform_indices = @transform_3, window_bounds = array<i64: 8, 72>}, {pipeline_mode = #tpu.pipeline_mode<synchronous>, transform_indices = @transform_4, window_bounds = array<i64: 24, 1>}, {transform_indices = @transform_5, window_bounds = array<i64: 1, 8, 384>}]} {
    %cst = arith.constant 0.000000e+00 : bf16
    %0 = vector.broadcast %cst : bf16 to vector<4x448xbf16>
    %c0 = arith.constant 0 : index
    %c0_0 = arith.constant 0 : index
    %1 = vector.load %arg7[%c0, %c0_0] : memref<4x448xbf16, #tpu.memory_space<vmem>>, vector<4x448xbf16>
    tpu.vector_store %arg7[%c0, %c0_0], %0 {strides = array<i32>} : memref<4x448xbf16, #tpu.memory_space<vmem>>, vector<4x448xbf16>,
    %c0_1 = arith.constant 0 : index
    %c0_2 = arith.constant 0 : index
    %c0_3 = arith.constant 0 : index
    %2 = vector.load %arg1[%c0_1, %c0_2, %c0_3] : memref<1x4x256xbf16, #tpu.memory_space<vmem>>, vector<1x4x16xbf16>
    %3 = vector.shape_cast %2 : vector<1x4x16xbf16> to vector<4x16xbf16>
    %c0_4 = arith.constant 0 : index
    %c33 = arith.constant 33 : index
    %4 = vector.load %arg7[%c0_4, %c33] : memref<4x448xbf16, #tpu.memory_space<vmem>>, vector<4x16xbf16>
    tpu.vector_store %arg7[%c0_4, %c33], %3 {strides = array<i32>} : memref<4x448xbf16, #tpu.memory_space<vmem>>, vector<4x16xbf16>,
    %c0_5 = arith.constant 0 : index
    %c0_6 = arith.constant 0 : index
    %c16 = arith.constant 16 : index
    %5 = vector.load %arg1[%c0_5, %c0_6, %c16] : memref<1x4x256xbf16, #tpu.memory_space<vmem>>, vector<1x4x16xbf16>
    %6 = vector.shape_cast %5 : vector<1x4x16xbf16> to vector<4x16xbf16>
    %c0_7 = arith.constant 0 : index
    %c57 = arith.constant 57 : index
    %7 = vector.load %arg7[%c0_7, %c57] : memref<4x448xbf16, #tpu.memory_space<vmem>>, vector<4x16xbf16>
    tpu.vector_store %arg7[%c0_7, %c57], %6 {strides = array<i32>} : memref<4x448xbf16, #tpu.memory_space<vmem>>, vector<4x16xbf16>,
    %c0_8 = arith.constant 0 : index
    %c0_9 = arith.constant 0 : index
    %c32 = arith.constant 32 : index
    %8 = vector.load %arg1[%c0_8, %c0_9, %c32] : memref<1x4x256xbf16, #tpu.memory_space<vmem>>, vector<1x4x16xbf16>
    %9 = vector.shape_cast %8 : vector<1x4x16xbf16> to vector<4x16xbf16>
    %c0_10 = arith.constant 0 : index
    %c81 = arith.constant 81 : index
    %10 = vector.load %arg7[%c0_10, %c81] : memref<4x448xbf16, #tpu.memory_space<vmem>>, vector<4x16xbf16>
    tpu.vector_store %arg7[%c0_10, %c81], %9 {strides = array<i32>} : memref<4x448xbf16, #tpu.memory_space<vmem>>, vector<4x16xbf16>,
    %c0_11 = arith.constant 0 : index
    %c0_12 = arith.constant 0 : index
    %c48 = arith.constant 48 : index
    %11 = vector.load %arg1[%c0_11, %c0_12, %c48] : memref<1x4x256xbf16, #tpu.memory_space<vmem>>, vector<1x4x16xbf16>
    %12 = vector.shape_cast %11 : vector<1x4x16xbf16> to vector<4x16xbf16>
    %c0_13 = arith.constant 0 : index
    %c105 = arith.constant 105 : index
    %13 = vector.load %arg7[%c0_13, %c105] : memref<4x448xbf16, #tpu.memory_space<vmem>>, vector<4x16xbf16>
    tpu.vector_store %arg7[%c0_13, %c105], %12 {strides = array<i32>} : memref<4x448xbf16, #tpu.memory_space<vmem>>, vector<4x16xbf16>,
    %c0_14 = arith.constant 0 : index
    %c0_15 = arith.constant 0 : index
    %c64 = arith.constant 64 : index
    %14 = vector.load %arg1[%c0_14, %c0_15, %c64] : memref<1x4x256xbf16, #tpu.memory_space<vmem>>, vector<1x4x16xbf16>
    %15 = vector.shape_cast %14 : vector<1x4x16xbf16> to vector<4x16xbf16>
    %c0_16 = arith.constant 0 : index
    %c129 = arith.constant 129 : index
    %16 = vector.load %arg7[%c0_16, %c129] : memref<4x448xbf16, #tpu.memory_space<vmem>>, vector<4x16xbf16>
    tpu.vector_store %arg7[%c0_16, %c129], %15 {strides = array<i32>} : memref<4x448xbf16, #tpu.memory_space<vmem>>, vector<4x16xbf16>,
    %c0_17 = arith.constant 0 : index
    %c0_18 = arith.constant 0 : index
    %c80 = arith.constant 80 : index
    %17 = vector.load %arg1[%c0_17, %c0_18, %c80] : memref<1x4x256xbf16, #tpu.memory_space<vmem>>, vector<1x4x16xbf16>
    %18 = vector.shape_cast %17 : vector<1x4x16xbf16> to vector<4x16xbf16>
    %c0_19 = arith.constant 0 : index
    %c153 = arith.constant 153 : index
    %19 = vector.load %arg7[%c0_19, %c153] : memref<4x448xbf16, #tpu.memory_space<vmem>>, vector<4x16xbf16>
    tpu.vector_store %arg7[%c0_19, %c153], %18 {strides = array<i32>} : memref<4x448xbf16, #tpu.memory_space<vmem>>, vector<4x16xbf16>,
    %c0_20 = arith.constant 0 : index
    %c0_21 = arith.constant 0 : index
    %c96 = arith.constant 96 : index
    %20 = vector.load %arg1[%c0_20, %c0_21, %c96] : memref<1x4x256xbf16, #tpu.memory_space<vmem>>, vector<1x4x16xbf16>
    %21 = vector.shape_cast %20 : vector<1x4x16xbf16> to vector<4x16xbf16>
    %c0_22 = arith.constant 0 : index
    %c177 = arith.constant 177 : index
    %22 = vector.load %arg7[%c0_22, %c177] : memref<4x448xbf16, #tpu.memory_space<vmem>>, vector<4x16xbf16>
    tpu.vector_store %arg7[%c0_22, %c177], %21 {strides = array<i32>} : memref<4x448xbf16, #tpu.memory_space<vmem>>, vector<4x16xbf16>,
    %c0_23 = arith.constant 0 : index
    %c0_24 = arith.constant 0 : index
    %c112 = arith.constant 112 : index
    %23 = vector.load %arg1[%c0_23, %c0_24, %c112] : memref<1x4x256xbf16, #tpu.memory_space<vmem>>, vector<1x4x16xbf16>
    %24 = vector.shape_cast %23 : vector<1x4x16xbf16> to vector<4x16xbf16>
    %c0_25 = arith.constant 0 : index
    %c201 = arith.constant 201 : index
    %25 = vector.load %arg7[%c0_25, %c201] : memref<4x448xbf16, #tpu.memory_space<vmem>>, vector<4x16xbf16>
    tpu.vector_store %arg7[%c0_25, %c201], %24 {strides = array<i32>} : memref<4x448xbf16, #tpu.memory_space<vmem>>, vector<4x16xbf16>,
    %c0_26 = arith.constant 0 : index
    %c0_27 = arith.constant 0 : index
    %c128 = arith.constant 128 : index
    %26 = vector.load %arg1[%c0_26, %c0_27, %c128] : memref<1x4x256xbf16, #tpu.memory_space<vmem>>, vector<1x4x16xbf16>
    %27 = vector.shape_cast %26 : vector<1x4x16xbf16> to vector<4x16xbf16>
    %c0_28 = arith.constant 0 : index
    %c225 = arith.constant 225 : index
    %28 = vector.load %arg7[%c0_28, %c225] : memref<4x448xbf16, #tpu.memory_space<vmem>>, vector<4x16xbf16>
    tpu.vector_store %arg7[%c0_28, %c225], %27 {strides = array<i32>} : memref<4x448xbf16, #tpu.memory_space<vmem>>, vector<4x16xbf16>,
    %c0_29 = arith.constant 0 : index
    %c0_30 = arith.constant 0 : index
    %c144 = arith.constant 144 : index
    %29 = vector.load %arg1[%c0_29, %c0_30, %c144] : memref<1x4x256xbf16, #tpu.memory_space<vmem>>, vector<1x4x16xbf16>
    %30 = vector.shape_cast %29 : vector<1x4x16xbf16> to vector<4x16xbf16>
    %c0_31 = arith.constant 0 : index
    %c249 = arith.constant 249 : index
    %31 = vector.load %arg7[%c0_31, %c249] : memref<4x448xbf16, #tpu.memory_space<vmem>>, vector<4x16xbf16>
    tpu.vector_store %arg7[%c0_31, %c249], %30 {strides = array<i32>} : memref<4x448xbf16, #tpu.memory_space<vmem>>, vector<4x16xbf16>,
    %c0_32 = arith.constant 0 : index
    %c0_33 = arith.constant 0 : index
    %c160 = arith.constant 160 : index
    %32 = vector.load %arg1[%c0_32, %c0_33, %c160] : memref<1x4x256xbf16, #tpu.memory_space<vmem>>, vector<1x4x16xbf16>
    %33 = vector.shape_cast %32 : vector<1x4x16xbf16> to vector<4x16xbf16>
    %c0_34 = arith.constant 0 : index
    %c273 = arith.constant 273 : index
    %34 = vector.load %arg7[%c0_34, %c273] : memref<4x448xbf16, #tpu.memory_space<vmem>>, vector<4x16xbf16>
    tpu.vector_store %arg7[%c0_34, %c273], %33 {strides = array<i32>} : memref<4x448xbf16, #tpu.memory_space<vmem>>, vector<4x16xbf16>,
    %c0_35 = arith.constant 0 : index
    %c0_36 = arith.constant 0 : index
    %c176 = arith.constant 176 : index
    %35 = vector.load %arg1[%c0_35, %c0_36, %c176] : memref<1x4x256xbf16, #tpu.memory_space<vmem>>, vector<1x4x16xbf16>
    %36 = vector.shape_cast %35 : vector<1x4x16xbf16> to vector<4x16xbf16>
    %c0_37 = arith.constant 0 : index
    %c297 = arith.constant 297 : index
    %37 = vector.load %arg7[%c0_37, %c297] : memref<4x448xbf16, #tpu.memory_space<vmem>>, vector<4x16xbf16>
    tpu.vector_store %arg7[%c0_37, %c297], %36 {strides = array<i32>} : memref<4x448xbf16, #tpu.memory_space<vmem>>, vector<4x16xbf16>,
    %c0_38 = arith.constant 0 : index
    %c0_39 = arith.constant 0 : index
    %c192 = arith.constant 192 : index
    %38 = vector.load %arg1[%c0_38, %c0_39, %c192] : memref<1x4x256xbf16, #tpu.memory_space<vmem>>, vector<1x4x16xbf16>
    %39 = vector.shape_cast %38 : vector<1x4x16xbf16> to vector<4x16xbf16>
    %c0_40 = arith.constant 0 : index
    %c321 = arith.constant 321 : index
    %40 = vector.load %arg7[%c0_40, %c321] : memref<4x448xbf16, #tpu.memory_space<vmem>>, vector<4x16xbf16>
    tpu.vector_store %arg7[%c0_40, %c321], %39 {strides = array<i32>} : memref<4x448xbf16, #tpu.memory_space<vmem>>, vector<4x16xbf16>,
    %c0_41 = arith.constant 0 : index
    %c0_42 = arith.constant 0 : index
    %c208 = arith.constant 208 : index
    %41 = vector.load %arg1[%c0_41, %c0_42, %c208] : memref<1x4x256xbf16, #tpu.memory_space<vmem>>, vector<1x4x16xbf16>
    %42 = vector.shape_cast %41 : vector<1x4x16xbf16> to vector<4x16xbf16>
    %c0_43 = arith.constant 0 : index
    %c345 = arith.constant 345 : index
    %43 = vector.load %arg7[%c0_43, %c345] : memref<4x448xbf16, #tpu.memory_space<vmem>>, vector<4x16xbf16>
    tpu.vector_store %arg7[%c0_43, %c345], %42 {strides = array<i32>} : memref<4x448xbf16, #tpu.memory_space<vmem>>, vector<4x16xbf16>,
    %c0_44 = arith.constant 0 : index
    %c0_45 = arith.constant 0 : index
    %c224 = arith.constant 224 : index
    %44 = vector.load %arg1[%c0_44, %c0_45, %c224] : memref<1x4x256xbf16, #tpu.memory_space<vmem>>, vector<1x4x16xbf16>
    %45 = vector.shape_cast %44 : vector<1x4x16xbf16> to vector<4x16xbf16>
    %c0_46 = arith.constant 0 : index
    %c369 = arith.constant 369 : index
    %46 = vector.load %arg7[%c0_46, %c369] : memref<4x448xbf16, #tpu.memory_space<vmem>>, vector<4x16xbf16>
    tpu.vector_store %arg7[%c0_46, %c369], %45 {strides = array<i32>} : memref<4x448xbf16, #tpu.memory_space<vmem>>, vector<4x16xbf16>,
    %c0_47 = arith.constant 0 : index
    %c0_48 = arith.constant 0 : index
    %c240 = arith.constant 240 : index
    %47 = vector.load %arg1[%c0_47, %c0_48, %c240] : memref<1x4x256xbf16, #tpu.memory_space<vmem>>, vector<1x4x16xbf16>
    %48 = vector.shape_cast %47 : vector<1x4x16xbf16> to vector<4x16xbf16>
    %c0_49 = arith.constant 0 : index
    %c393 = arith.constant 393 : index
    %49 = vector.load %arg7[%c0_49, %c393] : memref<4x448xbf16, #tpu.memory_space<vmem>>, vector<4x16xbf16>
    tpu.vector_store %arg7[%c0_49, %c393], %48 {strides = array<i32>} : memref<4x448xbf16, #tpu.memory_space<vmem>>, vector<4x16xbf16>,
    %cst_50 = arith.constant 0.000000e+00 : bf16
    %50 = vector.broadcast %cst_50 : bf16 to vector<8x32xbf16>
    %c0_51 = arith.constant 0 : index
    %c0_52 = arith.constant 0 : index
    %51 = vector.load %arg8[%c0_51, %c0_52] : memref<8x448xbf16, #tpu.memory_space<vmem>>, vector<8x32xbf16>
    tpu.vector_store %arg8[%c0_51, %c0_52], %50 {strides = array<i32>} : memref<8x448xbf16, #tpu.memory_space<vmem>>, vector<8x32xbf16>,
    %c0_53 = arith.constant 0 : index
    %c416 = arith.constant 416 : index
    %52 = vector.load %arg8[%c0_53, %c416] : memref<8x448xbf16, #tpu.memory_space<vmem>>, vector<8x32xbf16>
    tpu.vector_store %arg8[%c0_53, %c416], %50 {strides = array<i32>} : memref<8x448xbf16, #tpu.memory_space<vmem>>, vector<8x32xbf16>,
    %c0_54 = arith.constant 0 : index
    %c0_55 = arith.constant 0 : index
    %53 = vector.load %arg5[%c0_54, %c0_55] : memref<24x1xf32, #tpu.memory_space<vmem>>, vector<24x1xf32>
    %c0_56 = arith.constant 0 : index
    %c0_57 = arith.constant 0 : index
    %54 = vector.load %arg2[%c0_56, %c0_57] : memref<1x384xf32, #tpu.memory_space<vmem>>, vector<1x384xf32>
    %c0_58 = arith.constant 0 : index
    %c7 = arith.constant 7 : index
    %55 = vector.load %arg7[%c0_58, %c7] : memref<4x448xbf16, #tpu.memory_space<vmem>>, vector<4x384xbf16>
    %c0_59 = arith.constant 0 : index
    %c8 = arith.constant 8 : index
    %56 = vector.load %arg7[%c0_59, %c8] : memref<4x448xbf16, #tpu.memory_space<vmem>>, vector<4x384xbf16>
    %c0_60 = arith.constant 0 : index
    %c9 = arith.constant 9 : index
    %57 = vector.load %arg7[%c0_60, %c9] : memref<4x448xbf16, #tpu.memory_space<vmem>>, vector<4x384xbf16>
    %c0_61 = arith.constant 0 : index
    %c31 = arith.constant 31 : index
    %58 = vector.load %arg7[%c0_61, %c31] : memref<4x448xbf16, #tpu.memory_space<vmem>>, vector<4x384xbf16>
    %c0_62 = arith.constant 0 : index
    %c32_63 = arith.constant 32 : index
    %59 = vector.load %arg7[%c0_62, %c32_63] : memref<4x448xbf16, #tpu.memory_space<vmem>>, vector<4x384xbf16>
    %c0_64 = arith.constant 0 : index
    %c33_65 = arith.constant 33 : index
    %60 = vector.load %arg7[%c0_64, %c33_65] : memref<4x448xbf16, #tpu.memory_space<vmem>>, vector<4x384xbf16>
    %c0_66 = arith.constant 0 : index
    %c55 = arith.constant 55 : index
    %61 = vector.load %arg7[%c0_66, %c55] : memref<4x448xbf16, #tpu.memory_space<vmem>>, vector<4x384xbf16>
    %c0_67 = arith.constant 0 : index
    %c56 = arith.constant 56 : index
    %62 = vector.load %arg7[%c0_67, %c56] : memref<4x448xbf16, #tpu.memory_space<vmem>>, vector<4x384xbf16>
    %c0_68 = arith.constant 0 : index
    %c57_69 = arith.constant 57 : index
    %63 = vector.load %arg7[%c0_68, %c57_69] : memref<4x448xbf16, #tpu.memory_space<vmem>>, vector<4x384xbf16>
    %64 = tpu.concatenate %55, %56, %57, %58, %59, %60, %61, %62, %63 in 0 : vector<4x384xbf16>, vector<4x384xbf16>, vector<4x384xbf16>, vector<4x384xbf16>, vector<4x384xbf16>, vector<4x384xbf16>, vector<4x384xbf16>, vector<4x384xbf16>, vector<4x384xbf16> -> vector<36x384xbf16>
    %c0_70 = arith.constant 0 : index
    %c0_71 = arith.constant 0 : index
    %65 = vector.load %arg3[%c0_70, %c0_71] : memref<16x36xbf16, #tpu.memory_space<vmem>>, vector<16x36xbf16>
    %cst_72 = arith.constant dense<0.000000e+00> : vector<16x384xf32>
    %66 = tpu.matmul %65, %64, %cst_72 {dimension_numbers = #tpu.dot_dimension_numbers<[1], [0], [0], [1], [0, 0, 1, 1], [], []>} : vector<16x36xbf16>, vector<36x384xbf16>, vector<16x384xf32> -> vector<16x384xf32>
    %67 = vector.extract_strided_slice %53 {offsets = [0, 0], sizes = [16, 1], strides = [1, 1]} : vector<24x1xf32> to vector<16x1xf32>
    %68 = vector.broadcast %67 : vector<16x1xf32> to vector<16x384xf32>
    %69 = arith.addf %66, %68 : vector<16x384xf32>
    %70 = vector.extract_strided_slice %69 {offsets = [0, 0], sizes = [8, 384], strides = [1, 1]} : vector<16x384xf32> to vector<8x384xf32>
    %cst_73 = arith.constant 0.000000e+00 : f32
    %71 = vector.broadcast %cst_73 : f32 to vector<8x384xf32>
    %72 = arith.maximumf %70, %71 : vector<8x384xf32>
    %73 = vector.extract_strided_slice %69 {offsets = [8, 0], sizes = [8, 384], strides = [1, 1]} : vector<16x384xf32> to vector<8x384xf32>
    %74 = vector.broadcast %54 : vector<1x384xf32> to vector<8x384xf32>
    %75 = arith.mulf %72, %74 : vector<8x384xf32>
    %76 = arith.truncf %75 : vector<8x384xf32> to vector<8x384xbf16>
    %c0_74 = arith.constant 0 : index
    %c32_75 = arith.constant 32 : index
    %77 = vector.load %arg8[%c0_74, %c32_75] : memref<8x448xbf16, #tpu.memory_space<vmem>>, vector<8x384xbf16>
    tpu.vector_store %arg8[%c0_74, %c32_75], %76 {strides = array<i32>} : memref<8x448xbf16, #tpu.memory_space<vmem>>, vector<8x384xbf16>,
    %c0_76 = arith.constant 0 : index
    %c7_77 = arith.constant 7 : index
    %78 = vector.load %arg8[%c0_76, %c7_77] : memref<8x448xbf16, #tpu.memory_space<vmem>>, vector<8x384xbf16>
    %c0_78 = arith.constant 0 : index
    %c8_79 = arith.constant 8 : index
    %79 = vector.load %arg8[%c0_78, %c8_79] : memref<8x448xbf16, #tpu.memory_space<vmem>>, vector<8x384xbf16>
    %c0_80 = arith.constant 0 : index
    %c9_81 = arith.constant 9 : index
    %80 = vector.load %arg8[%c0_80, %c9_81] : memref<8x448xbf16, #tpu.memory_space<vmem>>, vector<8x384xbf16>
    %c0_82 = arith.constant 0 : index
    %c31_83 = arith.constant 31 : index
    %81 = vector.load %arg8[%c0_82, %c31_83] : memref<8x448xbf16, #tpu.memory_space<vmem>>, vector<8x384xbf16>
    %c0_84 = arith.constant 0 : index
    %c32_85 = arith.constant 32 : index
    %82 = vector.load %arg8[%c0_84, %c32_85] : memref<8x448xbf16, #tpu.memory_space<vmem>>, vector<8x384xbf16>
    %c0_86 = arith.constant 0 : index
    %c33_87 = arith.constant 33 : index
    %83 = vector.load %arg8[%c0_86, %c33_87] : memref<8x448xbf16, #tpu.memory_space<vmem>>, vector<8x384xbf16>
    %c0_88 = arith.constant 0 : index
    %c55_89 = arith.constant 55 : index
    %84 = vector.load %arg8[%c0_88, %c55_89] : memref<8x448xbf16, #tpu.memory_space<vmem>>, vector<8x384xbf16>
    %c0_90 = arith.constant 0 : index
    %c56_91 = arith.constant 56 : index
    %85 = vector.load %arg8[%c0_90, %c56_91] : memref<8x448xbf16, #tpu.memory_space<vmem>>, vector<8x384xbf16>
    %c0_92 = arith.constant 0 : index
    %c57_93 = arith.constant 57 : index
    %86 = vector.load %arg8[%c0_92, %c57_93] : memref<8x448xbf16, #tpu.memory_space<vmem>>, vector<8x384xbf16>
    %87 = tpu.concatenate %78, %79, %80, %81, %82, %83, %84, %85, %86 in 0 : vector<8x384xbf16>, vector<8x384xbf16>, vector<8x384xbf16>, vector<8x384xbf16>, vector<8x384xbf16>, vector<8x384xbf16>, vector<8x384xbf16>, vector<8x384xbf16>, vector<8x384xbf16> -> vector<72x384xbf16>
    %c0_94 = arith.constant 0 : index
    %c0_95 = arith.constant 0 : index
    %88 = vector.load %arg4[%c0_94, %c0_95] : memref<8x72xbf16, #tpu.memory_space<vmem>>, vector<8x72xbf16>
    %cst_96 = arith.constant dense<0.000000e+00> : vector<8x384xf32>
    %89 = tpu.matmul %88, %87, %cst_96 {dimension_numbers = #tpu.dot_dimension_numbers<[1], [0], [0], [1], [0, 0, 1, 1], [], []>} : vector<8x72xbf16>, vector<72x384xbf16>, vector<8x384xf32> -> vector<8x384xf32>
    %90 = vector.extract_strided_slice %53 {offsets = [16, 0], sizes = [8, 1], strides = [1, 1]} : vector<24x1xf32> to vector<8x1xf32>
    %91 = vector.broadcast %90 : vector<8x1xf32> to vector<8x384xf32>
    %92 = arith.addf %89, %91 : vector<8x384xf32>
    %93 = arith.addf %92, %73 : vector<8x384xf32>
    %cst_97 = arith.constant 0.000000e+00 : f32
    %94 = vector.broadcast %cst_97 : f32 to vector<8x384xf32>
    %95 = arith.maximumf %93, %94 : vector<8x384xf32>
    %c0_98 = arith.constant 0 : index
    %c0_99 = arith.constant 0 : index
    %c0_100 = arith.constant 0 : index
    %96 = vector.load %arg6[%c0_98, %c0_99, %c0_100] : memref<1x8x384xf32, #tpu.memory_space<vmem>>, vector<1x8x384xf32>
    %97 = vector.shape_cast %96 : vector<1x8x384xf32> to vector<8x384xf32>
    %98 = vector.shape_cast %95 : vector<8x384xf32> to vector<1x8x384xf32>
    tpu.vector_store %arg6[%c0_98, %c0_99, %c0_100], %98 {strides = array<i32>} : memref<1x8x384xf32, #tpu.memory_space<vmem>>, vector<1x8x384xf32>,
    return
  }
  func.func @transform_0(%arg0: i32) -> (i32, i32, i32) {
    %c0_i32 = arith.constant 0 : i32
    %c0_i32_0 = arith.constant 0 : i32
    %c0_i32_1 = arith.constant 0 : i32
    return %arg0, %c0_i32, %c0_i32_0 : i32, i32, i32
  }
  func.func @transform_1(%arg0: i32) -> (i32, i32) {
    %c0_i32 = arith.constant 0 : i32
    %c0_i32_0 = arith.constant 0 : i32
    %c0_i32_1 = arith.constant 0 : i32
    return %c0_i32, %c0_i32_0 : i32, i32
  }
  func.func @transform_2(%arg0: i32) -> (i32, i32) {
    %c0_i32 = arith.constant 0 : i32
    %c0_i32_0 = arith.constant 0 : i32
    %c0_i32_1 = arith.constant 0 : i32
    return %c0_i32, %c0_i32_0 : i32, i32
  }
  func.func @transform_3(%arg0: i32) -> (i32, i32) {
    %c0_i32 = arith.constant 0 : i32
    %c0_i32_0 = arith.constant 0 : i32
    %c0_i32_1 = arith.constant 0 : i32
    return %c0_i32, %c0_i32_0 : i32, i32
  }
  func.func @transform_4(%arg0: i32) -> (i32, i32) {
    %c0_i32 = arith.constant 0 : i32
    %c0_i32_0 = arith.constant 0 : i32
    %c0_i32_1 = arith.constant 0 : i32
    return %c0_i32, %c0_i32_0 : i32, i32
  }
  func.func @transform_5(%arg0: i32) -> (i32, i32, i32) {
    %c0_i32 = arith.constant 0 : i32
    %c0_i32_0 = arith.constant 0 : i32
    %c0_i32_1 = arith.constant 0 : i32
    return %arg0, %c0_i32, %c0_i32_0 : i32, i32, i32
  }
}

</mosaic_0001>

<llo_original>
// kernel: basic_block_forward.1
$region0: #{basic_block_forward.1}
  #allocation0 [shape = 'u32[]', space=smem, size = 0x4, offset = 0x4, fixed_abs, tag = 'smem constant byte address 0x4 - core index']
  #allocation1 [shape = 'u32[72,128]{1,0:T(1,128)}', space=vmem, size = 0x9000, scoped, tag = 'internal scratch']
  #allocation2 [shape = 'bf16[4,448]{1,0:T(4,128)(2,1)}', space=vmem, size = 0x1000, scoped, tag = 'scratch operand']
  #allocation3 [shape = 'bf16[8,448]{1,0:T(8,128)(2,1)}', space=vmem, size = 0x2000, scoped, tag = 'scratch operand']
  %s0 = inlined_call_operand.vmem [shape: bf16[2,4,256], index: 0, kind: input, shape index: {}]
  %s1 = inlined_call_operand.vmem [shape: f32[1,384], index: 1, kind: input, shape index: {}]
  %s2 = inlined_call_operand.vmem [shape: bf16[16,36], index: 2, kind: input, shape index: {}]
  %s3 = inlined_call_operand.vmem [shape: bf16[8,72], index: 3, kind: input, shape index: {}]
  %s4 = inlined_call_operand.vmem [shape: f32[24,1], index: 4, kind: input, shape index: {}]
  %s5 = inlined_call_operand.vmem [shape: f32[2,8,384], index: 5, kind: output, shape index: {}]
  %s6 = sld [smem:[#allocation0]]
  $region53: #{basic_block_forward.1} parent=0
    _
  %s8 = ssub.s32 1, %s6
  %s9 = scalar_select 0, %s8, %s6
  loop: start=0, step=1, limit=4
  $region2: #{basic_block_forward.1} parent=0 // loop_pre_header
    _
  $region3: #{basic_block_forward.1} parent=0 // loop_header
    %s11 = sphi 0, %s15
    %p12 = scmp.ge.s32.totalorder %s11, 4
    %s21 = sphi 0, %s23
    %s24 = sphi 0, %s21
    %s25 = sphi 0, %s24
    %s41 = sphi 0, %s25
    %s45 = sphi 0, %s45
    %s47 = sphi 0, %s45
    %s48 = sphi 0, %s47
    %s62 = sphi 0, %s48
    %s66 = sphi 0, %s66
    %s68 = sphi 0, %s66
    %s69 = sphi 0, %s68
    %s83 = sphi 0, %s69
    %s87 = sphi 0, %s87
    %s89 = sphi 0, %s87
    %s90 = sphi 0, %s89
    %s104 = sphi 0, %s90
    %s108 = sphi 0, %s108
    %s110 = sphi 0, %s108
    %s111 = sphi 0, %s110
    %s125 = sphi 0, %s111
    %s131 = sphi 0, %s133
    %s134 = sphi 0, %s131
    %s135 = sphi 0, %s134
    %s151 = sphi 0, %s135
  $region4: #{basic_block_forward.1} parent=0 // loop_header_branch
    %14 = sbr.rel (%p12) target = $region8
  $region5: #{basic_block_forward.1} parent=0 // loop_body
    %s16 = ssub.s32 %s11, 1
    %s17 = ssub.s32 %s11, 2
    %s18 = sadd.s32 %s11, 1
    %s19 = ssub.s32 %s11, %s18
    %p20 = scmp.eq.s32.totalorder %s19, 0
    %s22 = sadd.s32 %s21, 1
    %s23 = scalar_select %p20, %s21, %s22
    %p26 = pneg %p20
    %p27 = scmp.eq.s32.totalorder %s11, 1
    %p28 = por %p26, %p27
    %p29 = scmp.ne.s32.totalorder %s21, %s24
    %p30 = scmp.eq.s32.totalorder %s11, 0
    %p31 = por %p29, %p30
    %p32 = scmp.ne.s32.totalorder %s21, %s24
    %p33 = scmp.eq.s32.totalorder %s16, 1
    %p34 = por %p32, %p33
    %p35 = scmp.ne.s32.totalorder %s24, %s25
    %p36 = scmp.eq.s32.totalorder %s16, 0
    %p37 = por %p35, %p36
    %p38 = scmp.ne.s32.totalorder %s24, %s25
    %p39 = scmp.eq.s32.totalorder %s17, 1
    %p40 = por %p38, %p39
    %p42 = scmp.ne.s32.totalorder %s25, %s41
    %p43 = scmp.eq.s32.totalorder %s17, 0
    %p44 = por %p42, %p43
    %s46 = sadd.s32 %s45, 1
    %p49 = scmp.eq.s32.totalorder %s11, 1
    %p50 = scmp.ne.s32.totalorder %s45, %s47
    %p51 = scmp.eq.s32.totalorder %s11, 0
    %p52 = por %p50, %p51
    %p53 = scmp.ne.s32.totalorder %s45, %s47
    %p54 = scmp.eq.s32.totalorder %s16, 1
    %p55 = por %p53, %p54
    %p56 = scmp.ne.s32.totalorder %s47, %s48
    %p57 = scmp.eq.s32.totalorder %s16, 0
    %p58 = por %p56, %p57
    %p59 = scmp.ne.s32.totalorder %s47, %s48
    %p60 = scmp.eq.s32.totalorder %s17, 1
    %p61 = por %p59, %p60
    %p63 = scmp.ne.s32.totalorder %s48, %s62
    %p64 = scmp.eq.s32.totalorder %s17, 0
    %p65 = por %p63, %p64
    %s67 = sadd.s32 %s66, 1
    %p70 = scmp.eq.s32.totalorder %s11, 1
    %p71 = scmp.ne.s32.totalorder %s66, %s68
    %p72 = scmp.eq.s32.totalorder %s11, 0
    %p73 = por %p71, %p72
    %p74 = scmp.ne.s32.totalorder %s66, %s68
    %p75 = scmp.eq.s32.totalorder %s16, 1
    %p76 = por %p74, %p75
    %p77 = scmp.ne.s32.totalorder %s68, %s69
    %p78 = scmp.eq.s32.totalorder %s16, 0
    %p79 = por %p77, %p78
    %p80 = scmp.ne.s32.totalorder %s68, %s69
    %p81 = scmp.eq.s32.totalorder %s17, 1
    %p82 = por %p80, %p81
    %p84 = scmp.ne.s32.totalorder %s69, %s83
    %p85 = scmp.eq.s32.totalorder %s17, 0
    %p86 = por %p84, %p85
    %s88 = sadd.s32 %s87, 1
    %p91 = scmp.eq.s32.totalorder %s11, 1
    %p92 = scmp.ne.s32.totalorder %s87, %s89
    %p93 = scmp.eq.s32.totalorder %s11, 0
    %p94 = por %p92, %p93
    %p95 = scmp.ne.s32.totalorder %s87, %s89
    %p96 = scmp.eq.s32.totalorder %s16, 1
    %p97 = por %p95, %p96
    %p98 = scmp.ne.s32.totalorder %s89, %s90
    %p99 = scmp.eq.s32.totalorder %s16, 0
    %p100 = por %p98, %p99
    %p101 = scmp.ne.s32.totalorder %s89, %s90
    %p102 = scmp.eq.s32.totalorder %s17, 1
    %p103 = por %p101, %p102
    %p105 = scmp.ne.s32.totalorder %s90, %s104
    %p106 = scmp.eq.s32.totalorder %s17, 0
    %p107 = por %p105, %p106
    %s109 = sadd.s32 %s108, 1
    %p112 = scmp.eq.s32.totalorder %s11, 1
    %p113 = scmp.ne.s32.totalorder %s108, %s110
    %p114 = scmp.eq.s32.totalorder %s11, 0
    %p115 = por %p113, %p114
    %p116 = scmp.ne.s32.totalorder %s108, %s110
    %p117 = scmp.eq.s32.totalorder %s16, 1
    %p118 = por %p116, %p117
    %p119 = scmp.ne.s32.totalorder %s110, %s111
    %p120 = scmp.eq.s32.totalorder %s16, 0
    %p121 = por %p119, %p120
    %p122 = scmp.ne.s32.totalorder %s110, %s111
    %p123 = scmp.eq.s32.totalorder %s17, 1
    %p124 = por %p122, %p123
    %p126 = scmp.ne.s32.totalorder %s111, %s125
    %p127 = scmp.eq.s32.totalorder %s17, 0
    %p128 = por %p126, %p127
    %s129 = ssub.s32 %s11, %s18
    %p130 = scmp.eq.s32.totalorder %s129, 0
    %s132 = sadd.s32 %s131, 1
    %s133 = scalar_select %p130, %s131, %s132
    %p136 = pneg %p130
    %p137 = scmp.eq.s32.totalorder %s11, 1
    %p138 = por %p136, %p137
    %p139 = scmp.ne.s32.totalorder %s131, %s134
    %p140 = scmp.eq.s32.totalorder %s11, 0
    %p141 = por %p139, %p140
    %p142 = scmp.ne.s32.totalorder %s131, %s134
    %p143 = scmp.eq.s32.totalorder %s16, 1
    %p144 = por %p142, %p143
    %p145 = scmp.ne.s32.totalorder %s134, %s135
    %p146 = scmp.eq.s32.totalorder %s16, 0
    %p147 = por %p145, %p146
    %p148 = scmp.ne.s32.totalorder %s134, %s135
    %p149 = scmp.eq.s32.totalorder %s17, 1
    %p150 = por %p148, %p149
    %p152 = scmp.ne.s32.totalorder %s135, %s151
    %p153 = scmp.eq.s32.totalorder %s17, 0
    %p154 = por %p152, %p153
    %p155 = scmp.le.s32.totalorder 1, %s11
    %p156 = scmp.lt.s32.totalorder %s11, 3
    %p157 = pnand %p155, %p156
    %p158 = pneg %p157
    // Predicated region
    $region9: #{basic_block_forward.1} parent=5 // pred_check
      _
    $region10: #{basic_block_forward.1} parent=5 // pred_check_branch
      %160 = sbr.rel (%p157) target = $region12
    $region11: #{basic_block_forward.1} parent=5 // pred_region
      %s161 = ssub.s32 %s11, 1
      // Predicated region
      $region13: #{basic_block_forward.1} parent=11 // pred_check
        %p162 = pneg %p58
      $region14: #{basic_block_forward.1} parent=11 // pred_check_branch
        %164 = sbr.rel (%p162) target = $region16
      $region15: #{basic_block_forward.1} parent=11 // pred_region
        _
      $region16: #{basic_block_forward.1} parent=11 // pred_fallthru
        _
      // Predicated region
      $region17: #{basic_block_forward.1} parent=11 // pred_check
        %p165 = pneg %p79
      $region18: #{basic_block_forward.1} parent=11 // pred_check_branch
        %167 = sbr.rel (%p165) target = $region20
      $region19: #{basic_block_forward.1} parent=11 // pred_region
        _
      $region20: #{basic_block_forward.1} parent=11 // pred_fallthru
        _
      // Predicated region
      $region21: #{basic_block_forward.1} parent=11 // pred_check
        %p168 = pneg %p100
      $region22: #{basic_block_forward.1} parent=11 // pred_check_branch
        %170 = sbr.rel (%p168) target = $region24
      $region23: #{basic_block_forward.1} parent=11 // pred_region
        _
      $region24: #{basic_block_forward.1} parent=11 // pred_fallthru
        _
      // Predicated region
      $region25: #{basic_block_forward.1} parent=11 // pred_check
        %p171 = pneg %p121
      $region26: #{basic_block_forward.1} parent=11 // pred_check_branch
        %173 = sbr.rel (%p171) target = $region28
      $region27: #{basic_block_forward.1} parent=11 // pred_region
        _
      $region28: #{basic_block_forward.1} parent=11 // pred_fallthru
        _
    $region12: #{basic_block_forward.1} parent=5 // pred_fallthru
      _
    %p174 = scmp.lt.s32.totalorder %s11, 2
    // Predicated region
    $region29: #{basic_block_forward.1} parent=5 // pred_check
      %p175 = pneg %p174
    $region30: #{basic_block_forward.1} parent=5 // pred_check_branch
      %177 = sbr.rel (%p175) target = $region32
    $region31: #{basic_block_forward.1} parent=5 // pred_region
      // Predicated region
      $region33: #{basic_block_forward.1} parent=31 // pred_check
        %p178 = pneg %p31
      $region34: #{basic_block_forward.1} parent=31 // pred_check_branch
        %180 = sbr.rel (%p178) target = $region36
      $region35: #{basic_block_forward.1} parent=31 // pred_region
        %p181 = scmp.lt.s32.totalorder %s11, 1
        %s182 = scalar_select %p181, %s11, 1
        %s183 = smul.addr %s182, 2
        %s184 = smul.addr %s183, 2
        %s185 = scalar_lea.vmem %s0, %s184
      $region36: #{basic_block_forward.1} parent=31 // pred_fallthru
        _
    $region32: #{basic_block_forward.1} parent=5 // pred_fallthru
      _
    %p186 = scmp.le.s32.totalorder 1, %s11
    %p187 = scmp.lt.s32.totalorder %s11, 3
    %p188 = pnand %p186, %p187
    %p189 = pneg %p188
    // Predicated region
    $region37: #{basic_block_forward.1} parent=5 // pred_check
      _
    $region38: #{basic_block_forward.1} parent=5 // pred_check_branch
      %191 = sbr.rel (%p188) target = $region40
    $region39: #{basic_block_forward.1} parent=5 // pred_region
      %s192 = ssub.s32 %s11, 1
      %p193 = scmp.lt.s32.totalorder %s16, 1
      %s194 = scalar_select %p193, %s16, 1
      %s195 = smul.addr %s194, 2
      %s196 = smul.addr %s195, 2
      %s197 = scalar_lea.vmem %s0, %s196
      %p198 = pneg %p37
      %p199 = pneg %p34
      %p200 = pneg %p58
      %p201 = pneg %p55
      %p202 = pneg %p79
      %p203 = pneg %p76
      %p204 = pneg %p100
      %p205 = pneg %p97
      %p206 = pneg %p121
      %p207 = pneg %p118
      %p208 = pneg %p147
      %p209 = pneg %p144
      %p210 = scmp.lt.s32.totalorder %s16, 1
      %s211 = scalar_select %p210, %s16, 1
      %s212 = smul.addr %s211, 3
      %s213 = smul.addr %s212, 8
      %s214 = scalar_lea.vmem %s5, %s213
      %p215 = scmp.lt.s32.totalorder %s16, 1
      %s216 = scalar_select %p215, %s16, 1
      %s217 = smul.addr %s216, 2
      %s218 = smul.addr %s217, 2
      %s219 = scalar_lea.vmem %s0, %s218
      %p220 = scmp.lt.s32.totalorder %s16, 1
      %s221 = scalar_select %p220, %s16, 1
      %s222 = smul.addr %s221, 3
      %s223 = smul.addr %s222, 8
      %s224 = scalar_lea.vmem %s5, %s223
      %vm226 = vcmask 1041408
      %vm227 = vcmask 1043458
      %vm228 = vmor %vm227, %vm226
      %vm229 = vcmask 1045508
      %vm230 = vmor %vm229, %vm228
      %vm231 = vcmask 523270
      %vm232 = vmor %vm231, %vm230
      %233 = vst.msk [vmem:[#allocation2] sm:$0xff] %vm232, 0
      %v234 = vld [vmem:[%s219] sm:$0x3]
      %236 = vrot.lane.b32.xlu0 %v234, 33
      %v237 = vpop.permute.xlu0 %236
      %vm239 = vcmask 394504
      %240 = vst.msk [vmem:[#allocation2] sm:$0x3] %vm239, %v237
      %v241 = vld [vmem:[%s219] sm:$0x3]
      %243 = vrot.lane.b32.xlu0 %v241, 41
      %v244 = vpop.permute.xlu0 %243
      %vm246 = vcmask 591304
      %247 = vst.msk [vmem:[#allocation2] sm:$0x3] %vm246, %v244
      %v248 = vld [vmem:[%s219] sm:$0x3]
      %250 = vrot.lane.b32.xlu0 %v248, 49
      %v251 = vpop.permute.xlu0 %250
      %vm253 = vcmask 788104
      %254 = vst.msk [vmem:[#allocation2] sm:$0x3] %vm253, %v251
      %v255 = vld [vmem:[%s219] sm:$0x3]
      %257 = vrot.lane.b32.xlu0 %v255, 57
      %v258 = vpop.permute.xlu0 %257
      %vm260 = vcmask 984904
      %261 = vst.msk [vmem:[#allocation2] sm:$0x3] %vm260, %v258
      %v262 = vld [vmem:[%s219] sm:$0x3]
      %264 = vrot.lane.b32.xlu0 %v262, 65
      %v265 = vpop.permute.xlu0 %264
      %vm267 = vcmask 132104
      %268 = vst.msk [vmem:[#allocation2 + $0x2] sm:$0x3] %vm267, %v265
      %v269 = vld [vmem:[%s219] sm:$0x3]
      %271 = vrot.lane.b32.xlu0 %v269, 73
      %v272 = vpop.permute.xlu0 %271
      %vm274 = vcmask 328904
      %275 = vst.msk [vmem:[#allocation2 + $0x2] sm:$0x3] %vm274, %v272
      %v276 = vld [vmem:[%s219] sm:$0x3]
      %278 = vrot.lane.b32.xlu0 %v276, 81
      %v279 = vpop.permute.xlu0 %278
      %vm281 = vcmask 525704
      %282 = vst.msk [vmem:[#allocation2 + $0x2] sm:$0x3] %vm281, %v279
      %v283 = vld [vmem:[%s219] sm:$0x3]
      %285 = vrot.lane.b32.xlu0 %v283, 89
      %v286 = vpop.permute.xlu0 %285
      %vm288 = vcmask 722504
      %289 = vst.msk [vmem:[#allocation2 + $0x2] sm:$0x3] %vm288, %v286
      %v290 = vld [vmem:[%s219 + $0x2] sm:$0x3]
      %292 = vrot.lane.b32.xlu0 %v290, 97
      %v293 = vpop.permute.xlu0 %292
      %vm295 = vcmask 919304
      %296 = vst.msk [vmem:[#allocation2 + $0x2] sm:$0x3] %vm295, %v293
      %v297 = vld [vmem:[%s219 + $0x2] sm:$0x3]
      %299 = vrot.lane.b32.xlu0 %v297, 105
      %v300 = vpop.permute.xlu0 %299
      %v301 = vrot.slane %v300, 6
      %vm302 = vcmask 859136
      %v303 = vsel %vm302, %v301, %v300
      %vm305 = vcmask 1042376
      %vm306 = vcmask 68610
      %vm307 = vmor %vm306, %vm305
      %308 = vst.msk [vmem:[#allocation2 + $0x2] sm:$0xf] %vm307, %v303
      %v309 = vld [vmem:[%s219 + $0x2] sm:$0x3]
      %311 = vrot.lane.b32.xlu0 %v309, 113
      %v312 = vpop.permute.xlu0 %311
      %vm314 = vcmask 263304
      %315 = vst.msk [vmem:[#allocation2 + $0x4] sm:$0x3] %vm314, %v312
      %v316 = vld [vmem:[%s219 + $0x2] sm:$0x3]
      %318 = vrot.lane.b32.xlu0 %v316, 121
      %v319 = vpop.permute.xlu0 %318
      %vm321 = vcmask 460104
      %322 = vst.msk [vmem:[#allocation2 + $0x4] sm:$0x3] %vm321, %v319
      %v323 = vld [vmem:[%s219 + $0x2] sm:$0x3]
      %325 = vrot.lane.b32.xlu0 %v323, 1
      %v326 = vpop.permute.xlu0 %325
      %vm328 = vcmask 656904
      %329 = vst.msk [vmem:[#allocation2 + $0x4] sm:$0x3] %vm328, %v326
      %v330 = vld [vmem:[%s219 + $0x2] sm:$0x3]
      %332 = vrot.lane.b32.xlu0 %v330, 9
      %v333 = vpop.permute.xlu0 %332
      %vm335 = vcmask 853704
      %336 = vst.msk [vmem:[#allocation2 + $0x4] sm:$0x3] %vm335, %v333
      %v337 = vld [vmem:[%s219 + $0x2] sm:$0x3]
      %339 = vrot.lane.b32.xlu0 %v337, 17
      %v340 = vpop.permute.xlu0 %339
      %v341 = vrot.slane %v340, 6
      %vm342 = vcmask 138240
      %v343 = vsel %vm342, %v341, %v340
      %vm345 = vcmask 1042312
      %vm346 = vcmask 3074
      %vm347 = vmor %vm346, %vm345
      %348 = vst.msk [vmem:[#allocation2 + $0x4] sm:$0xf] %vm347, %v343
      %v349 = vld [vmem:[%s219 + $0x2] sm:$0x3]
      %351 = vrot.lane.b32.xlu0 %v349, 25
      %v352 = vpop.permute.xlu0 %351
      %vm354 = vcmask 197704
      %355 = vst.msk [vmem:[#allocation2 + $0x6] sm:$0x3] %vm354, %v352
      %vm356 = vcmask 257024
      %357 = vst.msk [vmem:[#allocation3] sm:$0xf] %vm356, 0
      %vm358 = vcmask 519424
      %359 = vst.msk [vmem:[#allocation3 + $0xc] sm:$0xf] %vm358, 0
      %v360 = vld [vmem:[%s4] sm:$0xff]
      %v361 = vld [vmem:[%s4 + $0x8] sm:$0xff]
      %v362 = vld [vmem:[%s4 + $0x10] sm:$0xff]
      %v363 = vld [vmem:[%s1] sm:$0x7]
      %v364 = vld [vmem:[#allocation2] sm:$0xff]
      %366 = vst [vmem:[#allocation1] ss:$4 sm:$0xff] %v364
      %v367 = vld.sshfl [vmem:[#allocation1] sm:$0xff pattern:$0x73625140]
      %v368 = vld.sshfl [vmem:[#allocation1 + $0x8] sm:$0xff pattern:$0x73625140]
      %v369 = vld.sshfl [vmem:[#allocation1 + $0x10] sm:$0xff pattern:$0x73625140]
      %v370 = vld.sshfl [vmem:[#allocation1 + $0x18] sm:$0xff pattern:$0x73625140]
      %s371 = scalar_lea.vmem [#allocation1], 1
      %372 = vst [vmem:[%s371] ss:$4 sm:$0xff] %v364
      %v373 = vld.sshfl [vmem:[#allocation1] sm:$0xff pattern:$0x73625140]
      %v375 = vld.sshfl [vmem:[#allocation1 + $0x8] sm:$0xff pattern:$0x73625140]
      %v377 = vld.sshfl [vmem:[#allocation1 + $0x10] sm:$0xff pattern:$0x73625140]
      %v379 = vld.sshfl [vmem:[#allocation1 + $0x18] sm:$0xff pattern:$0x73625140]
      %381 = vrot.lane.b32.xlu0 %v373, 127
      %v382 = vpop.permute.xlu0 %381
      %383 = vrot.lane.b32.xlu0 %v375, 127
      %v384 = vpop.permute.xlu0 %383
      %385 = vrot.lane.b32.xlu0 %v377, 127
      %v386 = vpop.permute.xlu0 %385
      %387 = vrot.lane.b32.xlu0 %v379, 127
      %v388 = vpop.permute.xlu0 %387
      %vm389 = vcmask 1039360
      %v390 = vsel %vm389, %v382, %v384
      %v391 = vsel %vm389, %v384, %v386
      %v392 = vsel %vm389, %v386, %v388
      %s393 = scalar_lea.vmem [#allocation1], 2
      %394 = vst [vmem:[%s393] ss:$4 sm:$0xff] %v364
      %v395 = vld.sshfl [vmem:[#allocation1] sm:$0xff pattern:$0x73625140]
      %v397 = vld.sshfl [vmem:[#allocation1 + $0x8] sm:$0xff pattern:$0x73625140]
      %v399 = vld.sshfl [vmem:[#allocation1 + $0x10] sm:$0xff pattern:$0x73625140]
      %v401 = vld.sshfl [vmem:[#allocation1 + $0x18] sm:$0xff pattern:$0x73625140]
      %403 = vrot.lane.b32.xlu0 %v395, 126
      %v404 = vpop.permute.xlu0 %403
      %405 = vrot.lane.b32.xlu0 %v397, 126
      %v406 = vpop.permute.xlu0 %405
      %407 = vrot.lane.b32.xlu0 %v399, 126
      %v408 = vpop.permute.xlu0 %407
      %409 = vrot.lane.b32.xlu0 %v401, 126
      %v410 = vpop.permute.xlu0 %409
      %vm411 = vcmask 1031168
      %v412 = vsel %vm411, %v404, %v406
      %v413 = vsel %vm411, %v406, %v408
      %v414 = vsel %vm411, %v408, %v410
      %s415 = scalar_lea.vmem [#allocation1], 3
      %416 = vst [vmem:[%s415] ss:$4 sm:$0xff] %v364
      %v417 = vld.sshfl [vmem:[#allocation1] sm:$0xff pattern:$0x73625140]
      %v419 = vld.sshfl [vmem:[#allocation1 + $0x8] sm:$0xff pattern:$0x73625140]
      %v421 = vld.sshfl [vmem:[#allocation1 + $0x10] sm:$0xff pattern:$0x73625140]
      %v423 = vld.sshfl [vmem:[#allocation1 + $0x18] sm:$0xff pattern:$0x73625140]
      %425 = vrot.lane.b32.xlu0 %v417, 104
      %v426 = vpop.permute.xlu0 %425
      %427 = vrot.lane.b32.xlu0 %v419, 104
      %v428 = vpop.permute.xlu0 %427
      %429 = vrot.lane.b32.xlu0 %v421, 104
      %v430 = vpop.permute.xlu0 %429
      %431 = vrot.lane.b32.xlu0 %v423, 104
      %v432 = vpop.permute.xlu0 %431
      %vm433 = vcmask 850944
      %v434 = vsel %vm433, %v426, %v428
      %v435 = vsel %vm433, %v428, %v430
      %v436 = vsel %vm433, %v430, %v432
      %437 = vst [vmem:[#allocation1] ss:$4 sm:$0xff] %v364
      %v438 = vld.sshfl [vmem:[#allocation1] sm:$0xff pattern:$0x73625140]
      %v440 = vld.sshfl [vmem:[#allocation1 + $0x8] sm:$0xff pattern:$0x73625140]
      %v442 = vld.sshfl [vmem:[#allocation1 + $0x10] sm:$0xff pattern:$0x73625140]
      %v444 = vld.sshfl [vmem:[#allocation1 + $0x18] sm:$0xff pattern:$0x73625140]
      %446 = vrot.lane.b32.xlu0 %v438, 103
      %v447 = vpop.permute.xlu0 %446
      %448 = vrot.lane.b32.xlu0 %v440, 103
      %v449 = vpop.permute.xlu0 %448
      %450 = vrot.lane.b32.xlu0 %v442, 103
      %v451 = vpop.permute.xlu0 %450
      %452 = vrot.lane.b32.xlu0 %v444, 103
      %v453 = vpop.permute.xlu0 %452
      %vm454 = vcmask 842752
      %v455 = vsel %vm454, %v447, %v449
      %v456 = vsel %vm454, %v449, %v451
      %v457 = vsel %vm454, %v451, %v453
      %s458 = scalar_lea.vmem [#allocation1], 1
      %459 = vst [vmem:[%s458] ss:$4 sm:$0xff] %v364
      %v460 = vld.sshfl [vmem:[#allocation1] sm:$0xff pattern:$0x73625140]
      %v462 = vld.sshfl [vmem:[#allocation1 + $0x8] sm:$0xff pattern:$0x73625140]
      %v464 = vld.sshfl [vmem:[#allocation1 + $0x10] sm:$0xff pattern:$0x73625140]
      %v466 = vld.sshfl [vmem:[#allocation1 + $0x18] sm:$0xff pattern:$0x73625140]
      %468 = vrot.lane.b32.xlu0 %v460, 102
      %v469 = vpop.permute.xlu0 %468
      %470 = vrot.lane.b32.xlu0 %v462, 102
      %v471 = vpop.permute.xlu0 %470
      %472 = vrot.lane.b32.xlu0 %v464, 102
      %v473 = vpop.permute.xlu0 %472
      %474 = vrot.lane.b32.xlu0 %v466, 102
      %v475 = vpop.permute.xlu0 %474
      %vm476 = vcmask 834560
      %v477 = vsel %vm476, %v469, %v471
      %v478 = vsel %vm476, %v471, %v473
      %v479 = vsel %vm476, %v473, %v475
      %s480 = scalar_lea.vmem [#allocation1], 2
      %481 = vst [vmem:[%s480] ss:$4 sm:$0xff] %v364
      %v482 = vld.sshfl [vmem:[#allocation1] sm:$0xff pattern:$0x73625140]
      %v484 = vld.sshfl [vmem:[#allocation1 + $0x8] sm:$0xff pattern:$0x73625140]
      %v486 = vld.sshfl [vmem:[#allocation1 + $0x10] sm:$0xff pattern:$0x73625140]
      %v488 = vld.sshfl [vmem:[#allocation1 + $0x18] sm:$0xff pattern:$0x73625140]
      %490 = vrot.lane.b32.xlu0 %v482, 80
      %v491 = vpop.permute.xlu0 %490
      %492 = vrot.lane.b32.xlu0 %v484, 80
      %v493 = vpop.permute.xlu0 %492
      %494 = vrot.lane.b32.xlu0 %v486, 80
      %v495 = vpop.permute.xlu0 %494
      %496 = vrot.lane.b32.xlu0 %v488, 80
      %v497 = vpop.permute.xlu0 %496
      %vm498 = vcmask 654336
      %v499 = vsel %vm498, %v491, %v493
      %v500 = vsel %vm498, %v493, %v495
      %v501 = vsel %vm498, %v495, %v497
      %s502 = scalar_lea.vmem [#allocation1], 3
      %503 = vst [vmem:[%s502] ss:$4 sm:$0xff] %v364
      %v504 = vld.sshfl [vmem:[#allocation1] sm:$0xff pattern:$0x73625140]
      %v506 = vld.sshfl [vmem:[#allocation1 + $0x8] sm:$0xff pattern:$0x73625140]
      %v508 = vld.sshfl [vmem:[#allocation1 + $0x10] sm:$0xff pattern:$0x73625140]
      %v510 = vld.sshfl [vmem:[#allocation1 + $0x18] sm:$0xff pattern:$0x73625140]
      %512 = vrot.lane.b32.xlu0 %v504, 79
      %v513 = vpop.permute.xlu0 %512
      %514 = vrot.lane.b32.xlu0 %v506, 79
      %v515 = vpop.permute.xlu0 %514
      %516 = vrot.lane.b32.xlu0 %v508, 79
      %v517 = vpop.permute.xlu0 %516
      %518 = vrot.lane.b32.xlu0 %v510, 79
      %v519 = vpop.permute.xlu0 %518
      %vm520 = vcmask 646144
      %v521 = vsel %vm520, %v513, %v515
      %v522 = vsel %vm520, %v515, %v517
      %v523 = vsel %vm520, %v517, %v519
      %524 = vst [vmem:[#allocation1] ss:$4 sm:$0xff] %v364
      %v525 = vld.sshfl [vmem:[#allocation1] sm:$0xff pattern:$0x73625140]
      %v527 = vld.sshfl [vmem:[#allocation1 + $0x8] sm:$0xff pattern:$0x73625140]
      %v529 = vld.sshfl [vmem:[#allocation1 + $0x10] sm:$0xff pattern:$0x73625140]
      %v531 = vld.sshfl [vmem:[#allocation1 + $0x18] sm:$0xff pattern:$0x73625140]
      %533 = vrot.lane.b32.xlu0 %v525, 78
      %v534 = vpop.permute.xlu0 %533
      %535 = vrot.lane.b32.xlu0 %v527, 78
      %v536 = vpop.permute.xlu0 %535
      %537 = vrot.lane.b32.xlu0 %v529, 78
      %v538 = vpop.permute.xlu0 %537
      %539 = vrot.lane.b32.xlu0 %v531, 78
      %v540 = vpop.permute.xlu0 %539
      %vm541 = vcmask 637952
      %v542 = vsel %vm541, %v534, %v536
      %v543 = vsel %vm541, %v536, %v538
      %v544 = vsel %vm541, %v538, %v540
      %v546 = vsel %vm226, %v367, %v390
      %v548 = vsel %vm226, %v368, %v391
      %v550 = vsel %vm226, %v369, %v392
      %v552 = vsel %vm226, %v370, %v388
      %vm553 = vcmask 1043456
      %v555 = vsel %vm553, %v546, %v412
      %v557 = vsel %vm553, %v548, %v413
      %v559 = vsel %vm553, %v550, %v414
      %v561 = vsel %vm553, %v552, %v410
      %vm562 = vcmask 1045504
      %v564 = vsel %vm562, %v555, %v434
      %v566 = vsel %vm562, %v557, %v435
      %v568 = vsel %vm562, %v559, %v436
      %v570 = vsel %vm562, %v561, %v432
      %v573 = vsel %vm226, %v455, %v477
      %v576 = vsel %vm226, %v456, %v478
      %v579 = vsel %vm226, %v457, %v479
      %v582 = vsel %vm226, %v453, %v475
      %v584 = vsel %vm553, %v573, %v499
      %v586 = vsel %vm553, %v576, %v500
      %v588 = vsel %vm553, %v579, %v501
      %v590 = vsel %vm553, %v582, %v497
      %v592 = vsel %vm562, %v584, %v521
      %v594 = vsel %vm562, %v586, %v522
      %v596 = vsel %vm562, %v588, %v523
      %v598 = vsel %vm562, %v590, %v519
      %v599 = vld [vmem:[%s2] sm:$0xf]
      %v600 = vld [vmem:[%s2 + $0x4] sm:$0xf]
      %602 = vset.pattern.permute.xlu0 0
      %603 = vperm.xlu0 %602, %v360
      %v604 = vpop.permute.xlu0 %603
      %607 = vset.pattern.permute.xlu0 0
      %608 = vperm.xlu0 %607, %v361
      %v609 = vpop.permute.xlu0 %608
      %v613 = vunpack.c.l.b16 %v599
      %v614 = vunpack.c.l.b16 %v600
      %v615 = vpack.c.b16 %v614, %v613
      %624 = vrot.lane.b32.xlu0 %v564, 121
      %v625 = vpop.permute.xlu0 %624
      %626 = vrot.lane.b32.xlu0 %v566, 121
      %v627 = vpop.permute.xlu0 %626
      %628 = vrot.lane.b32.xlu0 %v568, 121
      %v629 = vpop.permute.xlu0 %628
      %630 = vrot.lane.b32.xlu0 %v570, 121
      %v631 = vpop.permute.xlu0 %630
      %632 = vrot.lane.b32.xlu0 %v592, 121
      %v633 = vpop.permute.xlu0 %632
      %634 = vrot.lane.b32.xlu0 %v594, 121
      %v635 = vpop.permute.xlu0 %634
      %636 = vrot.lane.b32.xlu0 %v596, 121
      %v637 = vpop.permute.xlu0 %636
      %638 = vrot.lane.b32.xlu0 %v598, 121
      %v639 = vpop.permute.xlu0 %638
      %640 = vrot.lane.b32.xlu0 %v542, 121
      %v641 = vpop.permute.xlu0 %640
      %642 = vrot.lane.b32.xlu0 %v543, 121
      %v643 = vpop.permute.xlu0 %642
      %644 = vrot.lane.b32.xlu0 %v544, 121
      %v645 = vpop.permute.xlu0 %644
      %646 = vrot.lane.b32.xlu0 %v540, 121
      %v647 = vpop.permute.xlu0 %646
      %vm648 = vcmask 990208
      %v649 = vsel %vm648, %v625, %v627
      %v650 = vsel %vm648, %v627, %v629
      %v651 = vsel %vm648, %v629, %v631
      %v652 = vsel %vm648, %v633, %v635
      %v653 = vsel %vm648, %v635, %v637
      %v654 = vsel %vm648, %v637, %v639
      %v655 = vsel %vm648, %v641, %v643
      %v656 = vsel %vm648, %v643, %v645
      %v657 = vsel %vm648, %v645, %v647
      %vm664 = vcmask 293888
      %v666 = vsel %vm664, %v615, 0
      %v669 = vsel %vm226, %v655, 0
      %v672 = vsel %vm226, %v656, 0
      %v675 = vsel %vm226, %v657, 0
      %677 = vmatpush.bf16.msra.mxu0 0
      %678 = vmatpush.bf16.msra.mxu0 0
      %679 = vmatpush.bf16.msra.mxu0 0
      %680 = vmatpush.bf16.msra.mxu0 0
      %681 = vmatpush.bf16.msra.mxu0 0
      %682 = vmatpush.bf16.msra.mxu0 %v669
      %683 = vmatpush.bf16.msra.mxu0 %v652
      %684 = vmatpush.bf16.msra.mxu0 %v649
      %685 = vmatmul.bf16.gmra.mxu0 %v666
      %v686 = vpop.f32.mrf.mxu0
      %v687 = vadd.f32 %v604, %v686
      %v688 = vpop.f32.mrf.mxu0
      %v689 = vadd.f32 %v609, %v688
      %690 = vdwg.mxu0
      %691 = vmatpush.bf16.msra.mxu0 0
      %692 = vmatpush.bf16.msra.mxu0 0
      %693 = vmatpush.bf16.msra.mxu0 0
      %694 = vmatpush.bf16.msra.mxu0 0
      %695 = vmatpush.bf16.msra.mxu0 0
      %696 = vmatpush.bf16.msra.mxu0 %v672
      %697 = vmatpush.bf16.msra.mxu0 %v653
      %698 = vmatpush.bf16.msra.mxu0 %v650
      %699 = vmatmul.bf16.gmra.mxu0 %v666
      %v700 = vpop.f32.mrf.mxu0
      %v701 = vadd.f32 %v604, %v700
      %v702 = vpop.f32.mrf.mxu0
      %v703 = vadd.f32 %v609, %v702
      %704 = vdwg.mxu0
      %705 = vmatpush.bf16.msra.mxu0 0
      %706 = vmatpush.bf16.msra.mxu0 0
      %707 = vmatpush.bf16.msra.mxu0 0
      %708 = vmatpush.bf16.msra.mxu0 0
      %709 = vmatpush.bf16.msra.mxu0 0
      %710 = vmatpush.bf16.msra.mxu0 %v675
      %711 = vmatpush.bf16.msra.mxu0 %v654
      %712 = vmatpush.bf16.msra.mxu0 %v651
      %713 = vmatmul.bf16.gmra.mxu0 %v666
      %v714 = vpop.f32.mrf.mxu0
      %v715 = vadd.f32 %v604, %v714
      %v716 = vpop.f32.mrf.mxu0
      %v717 = vadd.f32 %v609, %v716
      %718 = vdwg.mxu0
      %v719 = vmax.f32 %v687, 0.0
      %v720 = vmax.f32 %v701, 0.0
      %v721 = vmax.f32 %v715, 0.0
      %v723 = vperm.slane %v363, 0
      %v724 = vperm.slane %v363, 1
      %v725 = vperm.slane %v363, 2
      %v729 = vmul.f32 %v719, %v723
      %v730 = vmul.f32 %v720, %v724
      %v731 = vmul.f32 %v721, %v725
      %v732 = vpack.c.bf16 %v730, %v729
      %v733 = vpack.c.bf16 %v731, %v731
      %736 = vrot.lane.b32.xlu0 %v732, 32
      %v737 = vpop.permute.xlu0 %736
      %738 = vrot.lane.b32.xlu0 %v733, 32
      %v739 = vpop.permute.xlu0 %738
      %v740 = vrot.slane %v737, 4
      %v741 = vrot.slane %v739, 4
      %vm742 = vcmask 261120
      %v743 = vsel %vm742, %v740, %v737
      %vm744 = vcmask 1043456
      %v745 = vsel %vm744, %v740, %v741
      %v746 = vsel %vm742, %v745, %v739
      %vm749 = vcmask 1043712
      %vm750 = vcmask 1047556
      %vm751 = vmor %vm750, %vm749
      %752 = vst.msk [vmem:[#allocation3] sm:$0xff] %vm751, %v743
      %vm753 = vcmask 261124
      %vm754 = vmor %vm753, %vm553
      %755 = vst.msk [vmem:[#allocation3 + $0x8] sm:$0xff] %vm754, %v746
      %v756 = vld [vmem:[#allocation3] sm:$0xff]
      %v757 = vld [vmem:[#allocation3 + $0x8] sm:$0xff]
      %v760 = vunpack.c.l.b16 %v756
      %v761 = vunpack.c.h.b16 %v756
      %v762 = vunpack.c.l.b16 %v757
      %v763 = vunpack.c.h.b16 %v757
      %v764 = vpack.c.b16 %v760, %v760
      %v765 = vpack.c.b16 %v761, %v761
      %v766 = vpack.c.b16 %v762, %v762
      %v767 = vpack.c.b16 %v763, %v763
      %768 = vrot.lane.b32.xlu0 %v764, 127
      %v769 = vpop.permute.xlu0 %768
      %770 = vrot.lane.b32.xlu0 %v765, 127
      %v771 = vpop.permute.xlu0 %770
      %772 = vrot.lane.b32.xlu0 %v766, 127
      %v773 = vpop.permute.xlu0 %772
      %774 = vrot.lane.b32.xlu0 %v767, 127
      %v775 = vpop.permute.xlu0 %774
      %v776 = vsel %vm389, %v769, %v771
      %v777 = vsel %vm389, %v771, %v773
      %v778 = vsel %vm389, %v773, %v775
      %779 = vrot.lane.b32.xlu0 %v764, 126
      %v780 = vpop.permute.xlu0 %779
      %781 = vrot.lane.b32.xlu0 %v765, 126
      %v782 = vpop.permute.xlu0 %781
      %783 = vrot.lane.b32.xlu0 %v766, 126
      %v784 = vpop.permute.xlu0 %783
      %785 = vrot.lane.b32.xlu0 %v767, 126
      %v786 = vpop.permute.xlu0 %785
      %v787 = vsel %vm411, %v780, %v782
      %v788 = vsel %vm411, %v782, %v784
      %v789 = vsel %vm411, %v784, %v786
      %790 = vrot.lane.b32.xlu0 %v764, 104
      %v791 = vpop.permute.xlu0 %790
      %792 = vrot.lane.b32.xlu0 %v765, 104
      %v793 = vpop.permute.xlu0 %792
      %794 = vrot.lane.b32.xlu0 %v766, 104
      %v795 = vpop.permute.xlu0 %794
      %796 = vrot.lane.b32.xlu0 %v767, 104
      %v797 = vpop.permute.xlu0 %796
      %v798 = vsel %vm433, %v791, %v793
      %v799 = vsel %vm433, %v793, %v795
      %v800 = vsel %vm433, %v795, %v797
      %801 = vrot.lane.b32.xlu0 %v764, 103
      %v802 = vpop.permute.xlu0 %801
      %803 = vrot.lane.b32.xlu0 %v765, 103
      %v804 = vpop.permute.xlu0 %803
      %805 = vrot.lane.b32.xlu0 %v766, 103
      %v806 = vpop.permute.xlu0 %805
      %807 = vrot.lane.b32.xlu0 %v767, 103
      %v808 = vpop.permute.xlu0 %807
      %v809 = vsel %vm454, %v802, %v804
      %v810 = vsel %vm454, %v804, %v806
      %v811 = vsel %vm454, %v806, %v808
      %812 = vrot.lane.b32.xlu0 %v764, 102
      %v813 = vpop.permute.xlu0 %812
      %814 = vrot.lane.b32.xlu0 %v765, 102
      %v815 = vpop.permute.xlu0 %814
      %816 = vrot.lane.b32.xlu0 %v766, 102
      %v817 = vpop.permute.xlu0 %816
      %818 = vrot.lane.b32.xlu0 %v767, 102
      %v819 = vpop.permute.xlu0 %818
      %v820 = vsel %vm476, %v813, %v815
      %v821 = vsel %vm476, %v815, %v817
      %v822 = vsel %vm476, %v817, %v819
      %823 = vrot.lane.b32.xlu0 %v764, 80
      %v824 = vpop.permute.xlu0 %823
      %825 = vrot.lane.b32.xlu0 %v765, 80
      %v826 = vpop.permute.xlu0 %825
      %827 = vrot.lane.b32.xlu0 %v766, 80
      %v828 = vpop.permute.xlu0 %827
      %829 = vrot.lane.b32.xlu0 %v767, 80
      %v830 = vpop.permute.xlu0 %829
      %v831 = vsel %vm498, %v824, %v826
      %v832 = vsel %vm498, %v826, %v828
      %v833 = vsel %vm498, %v828, %v830
      %834 = vrot.lane.b32.xlu0 %v764, 79
      %v835 = vpop.permute.xlu0 %834
      %836 = vrot.lane.b32.xlu0 %v765, 79
      %v837 = vpop.permute.xlu0 %836
      %838 = vrot.lane.b32.xlu0 %v766, 79
      %v839 = vpop.permute.xlu0 %838
      %840 = vrot.lane.b32.xlu0 %v767, 79
      %v841 = vpop.permute.xlu0 %840
      %v842 = vsel %vm520, %v835, %v837
      %v843 = vsel %vm520, %v837, %v839
      %v844 = vsel %vm520, %v839, %v841
      %845 = vrot.lane.b32.xlu0 %v764, 78
      %v846 = vpop.permute.xlu0 %845
      %847 = vrot.lane.b32.xlu0 %v765, 78
      %v848 = vpop.permute.xlu0 %847
      %849 = vrot.lane.b32.xlu0 %v766, 78
      %v850 = vpop.permute.xlu0 %849
      %851 = vrot.lane.b32.xlu0 %v767, 78
      %v852 = vpop.permute.xlu0 %851
      %v853 = vsel %vm541, %v846, %v848
      %v854 = vsel %vm541, %v848, %v850
      %v855 = vsel %vm541, %v850, %v852
      %v858 = vsel %vm553, %v764, %v776
      %v861 = vsel %vm553, %v765, %v777
      %v864 = vsel %vm553, %v766, %v778
      %v867 = vsel %vm553, %v767, %v775
      %v870 = vsel %vm553, %v787, %v798
      %v873 = vsel %vm553, %v788, %v799
      %v876 = vsel %vm553, %v789, %v800
      %v879 = vsel %vm553, %v786, %v797
      %v882 = vsel %vm553, %v809, %v820
      %v885 = vsel %vm553, %v810, %v821
      %v888 = vsel %vm553, %v811, %v822
      %v891 = vsel %vm553, %v808, %v819
      %v894 = vsel %vm553, %v831, %v842
      %v897 = vsel %vm553, %v832, %v843
      %v900 = vsel %vm553, %v833, %v844
      %v903 = vsel %vm553, %v830, %v841
      %v904 = vld [vmem:[%s3] sm:$0xf]
      %906 = vset.pattern.permute.xlu0 0
      %907 = vperm.xlu0 %906, %v362
      %v908 = vpop.permute.xlu0 %907
      %926 = vrot.lane.b32.xlu0 %v858, 121
      %v927 = vpop.permute.xlu0 %926
      %928 = vrot.lane.b32.xlu0 %v861, 121
      %v929 = vpop.permute.xlu0 %928
      %930 = vrot.lane.b32.xlu0 %v864, 121
      %v931 = vpop.permute.xlu0 %930
      %932 = vrot.lane.b32.xlu0 %v867, 121
      %v933 = vpop.permute.xlu0 %932
      %934 = vrot.lane.b32.xlu0 %v870, 121
      %v935 = vpop.permute.xlu0 %934
      %936 = vrot.lane.b32.xlu0 %v873, 121
      %v937 = vpop.permute.xlu0 %936
      %938 = vrot.lane.b32.xlu0 %v876, 121
      %v939 = vpop.permute.xlu0 %938
      %940 = vrot.lane.b32.xlu0 %v879, 121
      %v941 = vpop.permute.xlu0 %940
      %942 = vrot.lane.b32.xlu0 %v882, 121
      %v943 = vpop.permute.xlu0 %942
      %944 = vrot.lane.b32.xlu0 %v885, 121
      %v945 = vpop.permute.xlu0 %944
      %946 = vrot.lane.b32.xlu0 %v888, 121
      %v947 = vpop.permute.xlu0 %946
      %948 = vrot.lane.b32.xlu0 %v891, 121
      %v949 = vpop.permute.xlu0 %948
      %950 = vrot.lane.b32.xlu0 %v894, 121
      %v951 = vpop.permute.xlu0 %950
      %952 = vrot.lane.b32.xlu0 %v897, 121
      %v953 = vpop.permute.xlu0 %952
      %954 = vrot.lane.b32.xlu0 %v900, 121
      %v955 = vpop.permute.xlu0 %954
      %956 = vrot.lane.b32.xlu0 %v903, 121
      %v957 = vpop.permute.xlu0 %956
      %958 = vrot.lane.b32.xlu0 %v853, 121
      %v959 = vpop.permute.xlu0 %958
      %960 = vrot.lane.b32.xlu0 %v854, 121
      %v961 = vpop.permute.xlu0 %960
      %962 = vrot.lane.b32.xlu0 %v855, 121
      %v963 = vpop.permute.xlu0 %962
      %964 = vrot.lane.b32.xlu0 %v852, 121
      %v965 = vpop.permute.xlu0 %964
      %v966 = vsel %vm648, %v927, %v929
      %v967 = vsel %vm648, %v929, %v931
      %v968 = vsel %vm648, %v931, %v933
      %v969 = vsel %vm648, %v935, %v937
      %v970 = vsel %vm648, %v937, %v939
      %v971 = vsel %vm648, %v939, %v941
      %v972 = vsel %vm648, %v943, %v945
      %v973 = vsel %vm648, %v945, %v947
      %v974 = vsel %vm648, %v947, %v949
      %v975 = vsel %vm648, %v951, %v953
      %v976 = vsel %vm648, %v953, %v955
      %v977 = vsel %vm648, %v955, %v957
      %v978 = vsel %vm648, %v959, %v961
      %v979 = vsel %vm648, %v961, %v963
      %v980 = vsel %vm648, %v963, %v965
      %vm993 = vcmask 588800
      %v995 = vsel %vm993, %v904, 0
      %v998 = vsel %vm553, %v978, 0
      %v1001 = vsel %vm553, %v979, 0
      %v1004 = vsel %vm553, %v980, 0
      %1006 = vmatpush.bf16.msra.mxu0 0
      %1007 = vmatpush.bf16.msra.mxu0 0
      %1008 = vmatpush.bf16.msra.mxu0 0
      %1009 = vmatpush.bf16.msra.mxu0 %v998
      %1010 = vmatpush.bf16.msra.mxu0 %v975
      %1011 = vmatpush.bf16.msra.mxu0 %v972
      %1012 = vmatpush.bf16.msra.mxu0 %v969
      %1013 = vmatpush.bf16.msra.mxu0 %v966
      %1014 = vmatmul.bf16.gmra.mxu0 %v995
      %v1015 = vpop.f32.mrf.mxu0
      %v1016 = vadd.f32 %v908, %v1015
      %v1017 = vpop.f32.mrf.mxu0
      %1018 = vdwg.mxu0
      %1019 = vmatpush.bf16.msra.mxu0 0
      %1020 = vmatpush.bf16.msra.mxu0 0
      %1021 = vmatpush.bf16.msra.mxu0 0
      %1022 = vmatpush.bf16.msra.mxu0 %v1001
      %1023 = vmatpush.bf16.msra.mxu0 %v976
      %1024 = vmatpush.bf16.msra.mxu0 %v973
      %1025 = vmatpush.bf16.msra.mxu0 %v970
      %1026 = vmatpush.bf16.msra.mxu0 %v967
      %1027 = vmatmul.bf16.gmra.mxu0 %v995
      %v1028 = vpop.f32.mrf.mxu0
      %v1029 = vadd.f32 %v908, %v1028
      %v1030 = vpop.f32.mrf.mxu0
      %1031 = vdwg.mxu0
      %1032 = vmatpush.bf16.msra.mxu0 0
      %1033 = vmatpush.bf16.msra.mxu0 0
      %1034 = vmatpush.bf16.msra.mxu0 0
      %1035 = vmatpush.bf16.msra.mxu0 %v1004
      %1036 = vmatpush.bf16.msra.mxu0 %v977
      %1037 = vmatpush.bf16.msra.mxu0 %v974
      %1038 = vmatpush.bf16.msra.mxu0 %v971
      %1039 = vmatpush.bf16.msra.mxu0 %v968
      %1040 = vmatmul.bf16.gmra.mxu0 %v995
      %v1041 = vpop.f32.mrf.mxu0
      %v1042 = vadd.f32 %v908, %v1041
      %v1043 = vpop.f32.mrf.mxu0
      %1044 = vdwg.mxu0
      %v1045 = vadd.f32 %v1016, %v689
      %v1046 = vadd.f32 %v1029, %v703
      %v1047 = vadd.f32 %v1042, %v717
      %v1048 = vmax.f32 %v1045, 0.0
      %v1049 = vmax.f32 %v1046, 0.0
      %v1050 = vmax.f32 %v1047, 0.0
      %1051 = vst [vmem:[%s224] sm:$0xff] %v1048
      %1052 = vst [vmem:[%s224 + $0x8] sm:$0xff] %v1049
      %1053 = vst [vmem:[%s224 + $0x10] sm:$0xff] %v1050
      %p1054 = scmp.lt.s32.totalorder %s16, 1
      %s1055 = scalar_select %p1054, %s16, 1
      %s1056 = smul.addr %s1055, 3
      %s1057 = smul.addr %s1056, 8
      %s1058 = scalar_lea.vmem %s5, %s1057
      // Predicated region
      $region41: #{basic_block_forward.1} parent=39 // pred_check
        %p1059 = pneg %p144
      $region42: #{basic_block_forward.1} parent=39 // pred_check_branch
        %1061 = sbr.rel (%p1059) target = $region44
      $region43: #{basic_block_forward.1} parent=39 // pred_region
        _
      $region44: #{basic_block_forward.1} parent=39 // pred_fallthru
        _
    $region40: #{basic_block_forward.1} parent=5 // pred_fallthru
      _
    %p1062 = scmp.le.s32.totalorder 2, %s11
    // Predicated region
    $region45: #{basic_block_forward.1} parent=5 // pred_check
      %p1063 = pneg %p1062
    $region46: #{basic_block_forward.1} parent=5 // pred_check_branch
      %1065 = sbr.rel (%p1063) target = $region48
    $region47: #{basic_block_forward.1} parent=5 // pred_region
      %s1066 = ssub.s32 %s11, 2
      // Predicated region
      $region49: #{basic_block_forward.1} parent=47 // pred_check
        %p1067 = pneg %p150
      $region50: #{basic_block_forward.1} parent=47 // pred_check_branch
        %1069 = sbr.rel (%p1067) target = $region52
      $region51: #{basic_block_forward.1} parent=47 // pred_region
        %p1070 = scmp.lt.s32.totalorder %s17, 1
        %s1071 = scalar_select %p1070, %s17, 1
        %s1072 = smul.addr %s1071, 3
        %s1073 = smul.addr %s1072, 8
        %s1074 = scalar_lea.vmem %s5, %s1073
      $region52: #{basic_block_forward.1} parent=47 // pred_fallthru
        _
    $region48: #{basic_block_forward.1} parent=5 // pred_fallthru
      _
  $region6: #{basic_block_forward.1} parent=0 // loop_footer
    %s15 = sadd.s32 1, %s11
  $region7: #{basic_block_forward.1} parent=0 // loop_footer_branch
    %10 = sbr.rel target = $region3
  $region8: #{basic_block_forward.1} parent=0 // loop_exit
    _

</llo_original>
